<compile_context>
chip_gen: v6e
topology: v6e:2x2x1
jax: 0.10.0
libtpu: 0.0.40
codegen_flags: <defaults>
</compile_context>

<pallas_src>
import functools

import jax
import jax.numpy as jnp
from jax.experimental import pallas as pl
from jax.experimental.pallas import tpu as pltpu

LEAKY_SLOPE = 0.01   # F.leaky_relu default negative_slope


def _round_up(n, m):
    return ((n + m - 1) // m) * m


# --------------------------------- kernel ------------------------------------

def mlp_kernel(x_ref,
               w1_ref, b1_ref, w2_ref, b2_ref, w3_ref, b3_ref,
               w45_ref, b45_ref,
               o_ref):
    """Fused 4-matmul MLP (fc4/fc5 pre-folded) on one batch tile.

    x_ref: (TB, D_in); w_i: (in_i, out_i) pre-transposed (bf16 or f32);
    b_i: (1, out_i) f32; o_ref: (TB, D_out) f32.
    """
    cdt = w1_ref.dtype  # MXU input dtype (f32 or bf16); accumulation is f32.

    def leaky(v):
        return jnp.where(v >= 0, v, LEAKY_SLOPE * v)

    h = x_ref[...].astype(cdt)
    h = leaky(jnp.dot(h, w1_ref[...], preferred_element_type=jnp.float32)
              + b1_ref[...])
    # dropout(p=0.2) is identity in eval mode.
    h = leaky(jnp.dot(h.astype(cdt), w2_ref[...],
                      preferred_element_type=jnp.float32) + b2_ref[...])
    h = leaky(jnp.dot(h.astype(cdt), w3_ref[...],
                      preferred_element_type=jnp.float32) + b3_ref[...])
    # fc4 + fc5 folded into a single linear layer (no activation between them).
    o_ref[...] = (jnp.dot(h.astype(cdt), w45_ref[...],
                          preferred_element_type=jnp.float32)
                  + b45_ref[...]).astype(o_ref.dtype)


# ------------------------------ pallas wrapper --------------------------------

@functools.partial(jax.jit, static_argnames=("tile_b",))
def mlp_forward(params, x, *, tile_b=512):
    """params: prepared dict (see prepare_params). x: (B, input_size)."""
    B, D_in = x.shape
    D_out = params["w45"].shape[1]
    compute_dtype = params["w1"].dtype
    if x.dtype != compute_dtype:
        x = x.astype(compute_dtype)      # halves x DMA bytes on the bf16 path

    # Batch tile: as big as the batch allows (MXU M occupancy), multiple of 8,
    # but keep >= 2 grid steps when possible so both v7x TensorCores get work.
    tb = max(8, min(tile_b, B)) if B >= 8 else B
    if B >= 16 and pl.cdiv(B, tb) < 2:
        tb = min(tb, _round_up(pl.cdiv(B, 2), 8))
    grid = (pl.cdiv(B, tb),)

    weight_args = (params["w1"], params["b1"],
                   params["w2"], params["b2"],
                   params["w3"], params["b3"],
                   params["w45"], params["b45"])

    def x_map(i):
        return (i, 0)

    def w_map(i):
        return (0, 0)

    weight_specs = [pl.BlockSpec(w.shape, w_map) for w in weight_args]

    # Advisory cost estimate for the XLA scheduler.
    widths = [(params["w1"].shape), (params["w2"].shape),
              (params["w3"].shape), (params["w45"].shape)]
    flops = 2 * B * sum(int(di) * int(do) for di, do in widths)
    bytes_accessed = (int(x.size) * x.dtype.itemsize
                      + sum(int(a.size) * a.dtype.itemsize for a in weight_args)
                      + B * D_out * 4)
    cost = pl.CostEstimate(flops=flops, transcendentals=0,
                           bytes_accessed=bytes_accessed)

    # VMEM budget: x/out double buffers + (double-buffered) weights + f32 temps.
    max_w = max(int(params["w1"].shape[1]), int(params["w2"].shape[1]),
                int(params["w3"].shape[1]), D_out)
    est = (2 * tb * (D_in * x.dtype.itemsize + D_out * 4)
           + 2 * sum(int(a.size) * a.dtype.itemsize for a in weight_args)
           + 4 * tb * max_w * 4)
    vmem_limit = None
    if est > 12 * 1024 * 1024:           # only override the default when needed
        vmem_limit = min(_round_up(2 * est, 1 << 20), 48 * 1024 * 1024)

    return pl.pallas_call(
        mlp_kernel,
        out_shape=jax.ShapeDtypeStruct((B, D_out), jnp.float32),
        grid=grid,
        in_specs=[pl.BlockSpec((tb, D_in), x_map)] + weight_specs,
        out_specs=pl.BlockSpec((tb, D_out), x_map),
        compiler_params=pltpu.CompilerParams(
            dimension_semantics=("parallel",),
            vmem_limit_bytes=vmem_limit),
        cost_estimate=cost,
    )(x, *weight_args)


# --------------------------------- JAX glue -----------------------------------

def init_params(key, input_size, output_size, hidden_size):
    """Raw weights stored transposed to (in, out); biases as (1, out)."""
    dims = [input_size, 4 * hidden_size, 2 * hidden_size, hidden_size, 128,
            output_size]
    keys = jax.random.split(key, 2 * (len(dims) - 1))
    params = {}
    for i in range(len(dims) - 1):
        d_in, d_out = dims[i], dims[i + 1]
        bound = 1.0 / (d_in ** 0.5)          # nn.Linear default init range
        params[f"w{i + 1}"] = jax.random.uniform(
            keys[2 * i], (d_in, d_out), jnp.float32, -bound, bound)
        params[f"b{i + 1}"] = jax.random.uniform(
            keys[2 * i + 1], (1, d_out), jnp.float32, -bound, bound)
    return params


def prepare_params(raw, compute_dtype=jnp.float32, lane_multiple=128):
    """Fold fc4/fc5, zero-pad hidden widths to lane multiples, cast weights."""
    w1, b1 = raw["w1"], raw["b1"]
    w2, b2 = raw["w2"], raw["b2"]
    w3, b3 = raw["w3"], raw["b3"]
    # Exact fold: no activation between fc4 and fc5.
    w45 = raw["w4"] @ raw["w5"]
    b45 = raw["b4"] @ raw["w5"] + raw["b5"]

    def pad_width(w_out, b_out, w_next):
        """Zero-pad an activation width (numerically exact: leaky(0)=0)."""
        width = w_out.shape[1]
        target = _round_up(width, lane_multiple)
        if target != width:
            pad = target - width
            w_out = jnp.pad(w_out, ((0, 0), (0, pad)))
            b_out = jnp.pad(b_out, ((0, 0), (0, pad)))
            w_next = jnp.pad(w_next, ((0, pad), (0, 0)))
        return w_out, b_out, w_next

    w1, b1, w2 = pad_width(w1, b1, w2)
    w2, b2, w3 = pad_width(w2, b2, w3)
    w3, b3, w45 = pad_width(w3, b3, w45)

    return {
        "w1": w1.astype(compute_dtype), "b1": b1.astype(jnp.float32),
        "w2": w2.astype(compute_dtype), "b2": b2.astype(jnp.float32),
        "w3": w3.astype(compute_dtype), "b3": b3.astype(jnp.float32),
        "w45": w45.astype(compute_dtype), "b45": b45.astype(jnp.float32),
    }


def mlp_reference(raw, x):
    """Pure-JAX reference (unfolded, unpadded, f32) for correctness checking."""
    def leaky(v):
        return jnp.where(v >= 0, v, LEAKY_SLOPE * v)
    h = leaky(x @ raw["w1"] + raw["b1"])
    h = leaky(h @ raw["w2"] + raw["b2"])
    h = leaky(h @ raw["w3"] + raw["b3"])
    h = h @ raw["w4"] + raw["b4"]
    return h @ raw["w5"] + raw["b5"]


if __name__ == "__main__":
    input_size = 32
    output_size = 16
    hidden_size = 64     # layer widths: 32 -> 256 -> 128 -> 64 -> 128 -> 16
    B = 16

    key = jax.random.PRNGKey(0)
    kp, kx = jax.random.split(key)
    raw = init_params(kp, input_size, output_size, hidden_size)
    x = jax.random.normal(kx, (B, input_size), jnp.float32)

    ref = mlp_reference(raw, x)

    # f32 MXU-input path (exact up to the fc4/fc5-fold rounding).
    p32 = prepare_params(raw, compute_dtype=jnp.float32)
    out32 = jax.block_until_ready(mlp_forward(p32, x))
    assert out32.shape == (B, output_size) and out32.dtype == jnp.float32
    assert jnp.allclose(out32, ref, atol=1e-4, rtol=1e-4), "f32 mismatch vs ref"

    # bf16 MXU-input / f32-accumulate path (fast path on v6e / v7x).
    pbf = prepare_params(raw, compute_dtype=jnp.bfloat16)
    outbf = jax.block_until_ready(mlp_forward(pbf, x))
    assert outbf.shape == (B, output_size) and outbf.dtype == jnp.float32
    assert jnp.allclose(outbf, ref, atol=7e-2, rtol=7e-2), "bf16 mismatch vs ref"

    print("KERNEL_OK")
</pallas_src>

<mosaic_0001>
module attributes {stable_mosaic.version = 11 : i64} {
  func.func @mlp_kernel(%arg0: i32, %arg1: memref<8x32xf32, #tpu.memory_space<vmem>>, %arg2: memref<32x256xf32, #tpu.memory_space<vmem>>, %arg3: memref<1x256xf32, #tpu.memory_space<vmem>>, %arg4: memref<256x128xf32, #tpu.memory_space<vmem>>, %arg5: memref<1x128xf32, #tpu.memory_space<vmem>>, %arg6: memref<128x128xf32, #tpu.memory_space<vmem>>, %arg7: memref<1x128xf32, #tpu.memory_space<vmem>>, %arg8: memref<128x16xf32, #tpu.memory_space<vmem>>, %arg9: memref<1x16xf32, #tpu.memory_space<vmem>>, %arg10: memref<8x16xf32, #tpu.memory_space<vmem>>) attributes {dimension_semantics = [#tpu.dimension_semantics<parallel>], iteration_bounds = array<i64: 2>, scalar_prefetch = 0 : i64, scratch_operands = 0 : i64, tpu.core_type = #tpu.core_type<tc>, window_params = [{transform_indices = @transform_0, window_bounds = array<i64: 8, 32>}, {pipeline_mode = #tpu.pipeline_mode<synchronous>, transform_indices = @transform_1, window_bounds = array<i64: 32, 256>}, {pipeline_mode = #tpu.pipeline_mode<synchronous>, transform_indices = @transform_2, window_bounds = array<i64: 1, 256>}, {pipeline_mode = #tpu.pipeline_mode<synchronous>, transform_indices = @transform_3, window_bounds = array<i64: 256, 128>}, {pipeline_mode = #tpu.pipeline_mode<synchronous>, transform_indices = @transform_4, window_bounds = array<i64: 1, 128>}, {pipeline_mode = #tpu.pipeline_mode<synchronous>, transform_indices = @transform_5, window_bounds = array<i64: 128, 128>}, {pipeline_mode = #tpu.pipeline_mode<synchronous>, transform_indices = @transform_6, window_bounds = array<i64: 1, 128>}, {pipeline_mode = #tpu.pipeline_mode<synchronous>, transform_indices = @transform_7, window_bounds = array<i64: 128, 16>}, {pipeline_mode = #tpu.pipeline_mode<synchronous>, transform_indices = @transform_8, window_bounds = array<i64: 1, 16>}, {transform_indices = @transform_9, window_bounds = array<i64: 8, 16>}]} {
    %c0 = arith.constant 0 : index
    %c0_0 = arith.constant 0 : index
    %0 = vector.load %arg1[%c0, %c0_0] : memref<8x32xf32, #tpu.memory_space<vmem>>, vector<8x32xf32>
    %c0_1 = arith.constant 0 : index
    %c0_2 = arith.constant 0 : index
    %1 = vector.load %arg2[%c0_1, %c0_2] : memref<32x256xf32, #tpu.memory_space<vmem>>, vector<32x256xf32>
    %cst = arith.constant dense<0.000000e+00> : vector<8x256xf32>
    %2 = tpu.matmul %0, %1, %cst {dimension_numbers = #tpu.dot_dimension_numbers<[1], [0], [0], [1], [0, 0, 1, 1], [], []>} : vector<8x32xf32>, vector<32x256xf32>, vector<8x256xf32> -> vector<8x256xf32>
    %c0_3 = arith.constant 0 : index
    %c0_4 = arith.constant 0 : index
    %3 = vector.load %arg3[%c0_3, %c0_4] : memref<1x256xf32, #tpu.memory_space<vmem>>, vector<1x256xf32>
    %4 = vector.broadcast %3 : vector<1x256xf32> to vector<8x256xf32>
    %5 = arith.addf %2, %4 : vector<8x256xf32>
    %cst_5 = arith.constant 0.000000e+00 : f32
    %6 = vector.broadcast %cst_5 : f32 to vector<8x256xf32>
    %7 = arith.cmpf oge, %5, %6 : vector<8x256xf32>
    %cst_6 = arith.constant 0.00999999977 : f32
    %8 = vector.broadcast %cst_6 : f32 to vector<8x256xf32>
    %9 = arith.mulf %8, %5 : vector<8x256xf32>
    %10 = arith.select %7, %5, %9 : vector<8x256xi1>, vector<8x256xf32>
    %c0_7 = arith.constant 0 : index
    %c0_8 = arith.constant 0 : index
    %11 = vector.load %arg4[%c0_7, %c0_8] : memref<256x128xf32, #tpu.memory_space<vmem>>, vector<256x128xf32>
    %cst_9 = arith.constant dense<0.000000e+00> : vector<8x128xf32>
    %12 = tpu.matmul %10, %11, %cst_9 {dimension_numbers = #tpu.dot_dimension_numbers<[1], [0], [0], [1], [0, 0, 1, 1], [], []>} : vector<8x256xf32>, vector<256x128xf32>, vector<8x128xf32> -> vector<8x128xf32>
    %c0_10 = arith.constant 0 : index
    %c0_11 = arith.constant 0 : index
    %13 = vector.load %arg5[%c0_10, %c0_11] : memref<1x128xf32, #tpu.memory_space<vmem>>, vector<1x128xf32>
    %14 = vector.broadcast %13 : vector<1x128xf32> to vector<8x128xf32>
    %15 = arith.addf %12, %14 : vector<8x128xf32>
    %cst_12 = arith.constant 0.000000e+00 : f32
    %16 = vector.broadcast %cst_12 : f32 to vector<8x128xf32>
    %17 = arith.cmpf oge, %15, %16 : vector<8x128xf32>
    %cst_13 = arith.constant 0.00999999977 : f32
    %18 = vector.broadcast %cst_13 : f32 to vector<8x128xf32>
    %19 = arith.mulf %18, %15 : vector<8x128xf32>
    %20 = arith.select %17, %15, %19 : vector<8x128xi1>, vector<8x128xf32>
    %c0_14 = arith.constant 0 : index
    %c0_15 = arith.constant 0 : index
    %21 = vector.load %arg6[%c0_14, %c0_15] : memref<128x128xf32, #tpu.memory_space<vmem>>, vector<128x128xf32>
    %cst_16 = arith.constant dense<0.000000e+00> : vector<8x128xf32>
    %22 = tpu.matmul %20, %21, %cst_16 {dimension_numbers = #tpu.dot_dimension_numbers<[1], [0], [0], [1], [0, 0, 1, 1], [], []>} : vector<8x128xf32>, vector<128x128xf32>, vector<8x128xf32> -> vector<8x128xf32>
    %c0_17 = arith.constant 0 : index
    %c0_18 = arith.constant 0 : index
    %23 = vector.load %arg7[%c0_17, %c0_18] : memref<1x128xf32, #tpu.memory_space<vmem>>, vector<1x128xf32>
    %24 = vector.broadcast %23 : vector<1x128xf32> to vector<8x128xf32>
    %25 = arith.addf %22, %24 : vector<8x128xf32>
    %cst_19 = arith.constant 0.000000e+00 : f32
    %26 = vector.broadcast %cst_19 : f32 to vector<8x128xf32>
    %27 = arith.cmpf oge, %25, %26 : vector<8x128xf32>
    %cst_20 = arith.constant 0.00999999977 : f32
    %28 = vector.broadcast %cst_20 : f32 to vector<8x128xf32>
    %29 = arith.mulf %28, %25 : vector<8x128xf32>
    %30 = arith.select %27, %25, %29 : vector<8x128xi1>, vector<8x128xf32>
    %c0_21 = arith.constant 0 : index
    %c0_22 = arith.constant 0 : index
    %31 = vector.load %arg8[%c0_21, %c0_22] : memref<128x16xf32, #tpu.memory_space<vmem>>, vector<128x16xf32>
    %cst_23 = arith.constant dense<0.000000e+00> : vector<8x16xf32>
    %32 = tpu.matmul %30, %31, %cst_23 {dimension_numbers = #tpu.dot_dimension_numbers<[1], [0], [0], [1], [0, 0, 1, 1], [], []>} : vector<8x128xf32>, vector<128x16xf32>, vector<8x16xf32> -> vector<8x16xf32>
    %c0_24 = arith.constant 0 : index
    %c0_25 = arith.constant 0 : index
    %33 = vector.load %arg9[%c0_24, %c0_25] : memref<1x16xf32, #tpu.memory_space<vmem>>, vector<1x16xf32>
    %34 = vector.broadcast %33 : vector<1x16xf32> to vector<8x16xf32>
    %35 = arith.addf %32, %34 : vector<8x16xf32>
    %c0_26 = arith.constant 0 : index
    %c0_27 = arith.constant 0 : index
    %36 = vector.load %arg10[%c0_26, %c0_27] : memref<8x16xf32, #tpu.memory_space<vmem>>, vector<8x16xf32>
    tpu.vector_store %arg10[%c0_26, %c0_27], %35 {strides = array<i32>} : memref<8x16xf32, #tpu.memory_space<vmem>>, vector<8x16xf32>,
    return
  }
  func.func @transform_0(%arg0: i32) -> (i32, i32) {
    %c0_i32 = arith.constant 0 : i32
    %c0_i32_0 = arith.constant 0 : i32
    return %arg0, %c0_i32 : i32, i32
  }
  func.func @transform_1(%arg0: i32) -> (i32, i32) {
    %c0_i32 = arith.constant 0 : i32
    %c0_i32_0 = arith.constant 0 : i32
    %c0_i32_1 = arith.constant 0 : i32
    return %c0_i32, %c0_i32_0 : i32, i32
  }
  func.func @transform_2(%arg0: i32) -> (i32, i32) {
    %c0_i32 = arith.constant 0 : i32
    %c0_i32_0 = arith.constant 0 : i32
    %c0_i32_1 = arith.constant 0 : i32
    return %c0_i32, %c0_i32_0 : i32, i32
  }
  func.func @transform_3(%arg0: i32) -> (i32, i32) {
    %c0_i32 = arith.constant 0 : i32
    %c0_i32_0 = arith.constant 0 : i32
    %c0_i32_1 = arith.constant 0 : i32
    return %c0_i32, %c0_i32_0 : i32, i32
  }
  func.func @transform_4(%arg0: i32) -> (i32, i32) {
    %c0_i32 = arith.constant 0 : i32
    %c0_i32_0 = arith.constant 0 : i32
    %c0_i32_1 = arith.constant 0 : i32
    return %c0_i32, %c0_i32_0 : i32, i32
  }
  func.func @transform_5(%arg0: i32) -> (i32, i32) {
    %c0_i32 = arith.constant 0 : i32
    %c0_i32_0 = arith.constant 0 : i32
    %c0_i32_1 = arith.constant 0 : i32
    return %c0_i32, %c0_i32_0 : i32, i32
  }
  func.func @transform_6(%arg0: i32) -> (i32, i32) {
    %c0_i32 = arith.constant 0 : i32
    %c0_i32_0 = arith.constant 0 : i32
    %c0_i32_1 = arith.constant 0 : i32
    return %c0_i32, %c0_i32_0 : i32, i32
  }
  func.func @transform_7(%arg0: i32) -> (i32, i32) {
    %c0_i32 = arith.constant 0 : i32
    %c0_i32_0 = arith.constant 0 : i32
    %c0_i32_1 = arith.constant 0 : i32
    return %c0_i32, %c0_i32_0 : i32, i32
  }
  func.func @transform_8(%arg0: i32) -> (i32, i32) {
    %c0_i32 = arith.constant 0 : i32
    %c0_i32_0 = arith.constant 0 : i32
    %c0_i32_1 = arith.constant 0 : i32
    return %c0_i32, %c0_i32_0 : i32, i32
  }
  func.func @transform_9(%arg0: i32) -> (i32, i32) {
    %c0_i32 = arith.constant 0 : i32
    %c0_i32_0 = arith.constant 0 : i32
    return %arg0, %c0_i32 : i32, i32
  }
}

</mosaic_0001>

<llo_original>
// kernel: mlp_forward.1
$region0: #{mlp_forward.1}
  #allocation0 [shape = 'u32[]', space=smem, size = 0x4, offset = 0x4, fixed_abs, tag = 'smem constant byte address 0x4 - core index']
  #allocation1 [shape = 'u32[144,128]{1,0:T(1,128)}', space=vmem, size = 0x12000, scoped, tag = 'internal scratch']
  %s0 = inlined_call_operand.vmem [shape: f32[16,32], index: 0, kind: input, shape index: {}]
  %s1 = inlined_call_operand.hbm [shape: f32[32,256], index: 1, kind: input, shape index: {}]
  %s2 = inlined_call_operand.vmem [shape: f32[1,256], index: 2, kind: input, shape index: {}]
  %s3 = inlined_call_operand.hbm [shape: f32[256,128], index: 3, kind: input, shape index: {}]
  %s4 = inlined_call_operand.vmem [shape: f32[1,128], index: 4, kind: input, shape index: {}]
  %s5 = inlined_call_operand.vmem [shape: f32[128,128], index: 5, kind: input, shape index: {}]
  %s6 = inlined_call_operand.vmem [shape: f32[1,128], index: 6, kind: input, shape index: {}]
  %s7 = inlined_call_operand.vmem [shape: f32[128,16], index: 7, kind: input, shape index: {}]
  %s8 = inlined_call_operand.vmem [shape: f32[1,16], index: 8, kind: input, shape index: {}]
  %s9 = inlined_call_operand.hbm [shape: f32[16,16], index: 9, kind: output, shape index: {}]
  %s10 = sld [smem:[#allocation0]]
  $region77: #{mlp_forward.1} parent=0
    _
  %s12 = ssub.s32 1, %s10
  %s13 = scalar_select 0, %s12, %s10
  $region1: #{mlp_forward.1} parent=0
    #allocation2 [shape = 'u8[32768]{0}', space=vmem, size = 0x8000, scoped, tag = 'input window, operand 1, single buffered']
    #allocation3 [shape = 's32[2]{0}', space=sflag, size = 0x8, scoped, tag = 'scoped memory for mlp_forward.1']
    #allocation4 [shape = 's32[2]{0}', space=sflag, size = 0x8, scoped, tag = 'scoped memory for mlp_forward.1']
    #allocation5 [shape = 'u8[131072]{0}', space=vmem, size = 0x20000, scoped, tag = 'input window, operand 3, single buffered']
    #allocation6 [shape = 's32[1]{0}', space=sflag, size = 0x4, scoped, tag = 'scoped memory for mlp_forward.1']
    #allocation7 [shape = 'u8[8192]{0}', space=vmem, size = 0x2000, scoped, tag = 'output window, operand 0']
    %14 = vsyncpa [#allocation3], 0
    %15 = vsyncpa [#allocation6], 0
    %16 = vsyncpa [#allocation4], 0
    %s17 = scalar_lea.sflag [#allocation4], 1
    %18 = vsyncpa %s17, 0
    loop: start=0, step=1, limit=4
    $region2: #{mlp_forward.1} parent=1 // loop_pre_header
      _
    $region3: #{mlp_forward.1} parent=1 // loop_header
      %s20 = sphi 0, %s24
      %p21 = scmp.ge.s32.totalorder %s20, 4
      %s30 = sphi 0, %s32
      %s33 = sphi 0, %s30
      %s34 = sphi 0, %s33
      %s50 = sphi 0, %s34
      %s54 = sphi 0, %s54
      %s56 = sphi 0, %s54
      %s57 = sphi 0, %s56
      %s71 = sphi 0, %s57
      %s75 = sphi 0, %s75
      %s77 = sphi 0, %s75
      %s78 = sphi 0, %s77
      %s92 = sphi 0, %s78
      %s96 = sphi 0, %s96
      %s98 = sphi 0, %s96
      %s99 = sphi 0, %s98
      %s113 = sphi 0, %s99
      %s117 = sphi 0, %s117
      %s119 = sphi 0, %s117
      %s120 = sphi 0, %s119
      %s134 = sphi 0, %s120
      %s138 = sphi 0, %s138
      %s140 = sphi 0, %s138
      %s141 = sphi 0, %s140
      %s155 = sphi 0, %s141
      %s159 = sphi 0, %s159
      %s161 = sphi 0, %s159
      %s162 = sphi 0, %s161
      %s176 = sphi 0, %s162
      %s180 = sphi 0, %s180
      %s182 = sphi 0, %s180
      %s183 = sphi 0, %s182
      %s197 = sphi 0, %s183
      %s201 = sphi 0, %s201
      %s203 = sphi 0, %s201
      %s204 = sphi 0, %s203
      %s218 = sphi 0, %s204
      %s224 = sphi 0, %s226
      %s227 = sphi 0, %s224
      %s228 = sphi 0, %s227
      %s244 = sphi 0, %s228
    $region4: #{mlp_forward.1} parent=1 // loop_header_branch
      %23 = sbr.rel (%p21) target = $region8
    $region5: #{mlp_forward.1} parent=1 // loop_body
      %s25 = ssub.s32 %s20, 1
      %s26 = ssub.s32 %s20, 2
      %s27 = sadd.s32 %s20, 1
      %s28 = ssub.s32 %s20, %s27
      %p29 = scmp.eq.s32.totalorder %s28, 0
      %s31 = sadd.s32 %s30, 1
      %s32 = scalar_select %p29, %s30, %s31
      %p35 = pneg %p29
      %p36 = scmp.eq.s32.totalorder %s20, 1
      %p37 = por %p35, %p36
      %p38 = scmp.ne.s32.totalorder %s30, %s33
      %p39 = scmp.eq.s32.totalorder %s20, 0
      %p40 = por %p38, %p39
      %p41 = scmp.ne.s32.totalorder %s30, %s33
      %p42 = scmp.eq.s32.totalorder %s25, 1
      %p43 = por %p41, %p42
      %p44 = scmp.ne.s32.totalorder %s33, %s34
      %p45 = scmp.eq.s32.totalorder %s25, 0
      %p46 = por %p44, %p45
      %p47 = scmp.ne.s32.totalorder %s33, %s34
      %p48 = scmp.eq.s32.totalorder %s26, 1
      %p49 = por %p47, %p48
      %p51 = scmp.ne.s32.totalorder %s34, %s50
      %p52 = scmp.eq.s32.totalorder %s26, 0
      %p53 = por %p51, %p52
      %s55 = sadd.s32 %s54, 1
      %p58 = scmp.eq.s32.totalorder %s20, 1
      %p59 = scmp.ne.s32.totalorder %s54, %s56
      %p60 = scmp.eq.s32.totalorder %s20, 0
      %p61 = por %p59, %p60
      %p62 = scmp.ne.s32.totalorder %s54, %s56
      %p63 = scmp.eq.s32.totalorder %s25, 1
      %p64 = por %p62, %p63
      %p65 = scmp.ne.s32.totalorder %s56, %s57
      %p66 = scmp.eq.s32.totalorder %s25, 0
      %p67 = por %p65, %p66
      %p68 = scmp.ne.s32.totalorder %s56, %s57
      %p69 = scmp.eq.s32.totalorder %s26, 1
      %p70 = por %p68, %p69
      %p72 = scmp.ne.s32.totalorder %s57, %s71
      %p73 = scmp.eq.s32.totalorder %s26, 0
      %p74 = por %p72, %p73
      %s76 = sadd.s32 %s75, 1
      %p79 = scmp.eq.s32.totalorder %s20, 1
      %p80 = scmp.ne.s32.totalorder %s75, %s77
      %p81 = scmp.eq.s32.totalorder %s20, 0
      %p82 = por %p80, %p81
      %p83 = scmp.ne.s32.totalorder %s75, %s77
      %p84 = scmp.eq.s32.totalorder %s25, 1
      %p85 = por %p83, %p84
      %p86 = scmp.ne.s32.totalorder %s77, %s78
      %p87 = scmp.eq.s32.totalorder %s25, 0
      %p88 = por %p86, %p87
      %p89 = scmp.ne.s32.totalorder %s77, %s78
      %p90 = scmp.eq.s32.totalorder %s26, 1
      %p91 = por %p89, %p90
      %p93 = scmp.ne.s32.totalorder %s78, %s92
      %p94 = scmp.eq.s32.totalorder %s26, 0
      %p95 = por %p93, %p94
      %s97 = sadd.s32 %s96, 1
      %p100 = scmp.eq.s32.totalorder %s20, 1
      %p101 = scmp.ne.s32.totalorder %s96, %s98
      %p102 = scmp.eq.s32.totalorder %s20, 0
      %p103 = por %p101, %p102
      %p104 = scmp.ne.s32.totalorder %s96, %s98
      %p105 = scmp.eq.s32.totalorder %s25, 1
      %p106 = por %p104, %p105
      %p107 = scmp.ne.s32.totalorder %s98, %s99
      %p108 = scmp.eq.s32.totalorder %s25, 0
      %p109 = por %p107, %p108
      %p110 = scmp.ne.s32.totalorder %s98, %s99
      %p111 = scmp.eq.s32.totalorder %s26, 1
      %p112 = por %p110, %p111
      %p114 = scmp.ne.s32.totalorder %s99, %s113
      %p115 = scmp.eq.s32.totalorder %s26, 0
      %p116 = por %p114, %p115
      %s118 = sadd.s32 %s117, 1
      %p121 = scmp.eq.s32.totalorder %s20, 1
      %p122 = scmp.ne.s32.totalorder %s117, %s119
      %p123 = scmp.eq.s32.totalorder %s20, 0
      %p124 = por %p122, %p123
      %p125 = scmp.ne.s32.totalorder %s117, %s119
      %p126 = scmp.eq.s32.totalorder %s25, 1
      %p127 = por %p125, %p126
      %p128 = scmp.ne.s32.totalorder %s119, %s120
      %p129 = scmp.eq.s32.totalorder %s25, 0
      %p130 = por %p128, %p129
      %p131 = scmp.ne.s32.totalorder %s119, %s120
      %p132 = scmp.eq.s32.totalorder %s26, 1
      %p133 = por %p131, %p132
      %p135 = scmp.ne.s32.totalorder %s120, %s134
      %p136 = scmp.eq.s32.totalorder %s26, 0
      %p137 = por %p135, %p136
      %s139 = sadd.s32 %s138, 1
      %p142 = scmp.eq.s32.totalorder %s20, 1
      %p143 = scmp.ne.s32.totalorder %s138, %s140
      %p144 = scmp.eq.s32.totalorder %s20, 0
      %p145 = por %p143, %p144
      %p146 = scmp.ne.s32.totalorder %s138, %s140
      %p147 = scmp.eq.s32.totalorder %s25, 1
      %p148 = por %p146, %p147
      %p149 = scmp.ne.s32.totalorder %s140, %s141
      %p150 = scmp.eq.s32.totalorder %s25, 0
      %p151 = por %p149, %p150
      %p152 = scmp.ne.s32.totalorder %s140, %s141
      %p153 = scmp.eq.s32.totalorder %s26, 1
      %p154 = por %p152, %p153
      %p156 = scmp.ne.s32.totalorder %s141, %s155
      %p157 = scmp.eq.s32.totalorder %s26, 0
      %p158 = por %p156, %p157
      %s160 = sadd.s32 %s159, 1
      %p163 = scmp.eq.s32.totalorder %s20, 1
      %p164 = scmp.ne.s32.totalorder %s159, %s161
      %p165 = scmp.eq.s32.totalorder %s20, 0
      %p166 = por %p164, %p165
      %p167 = scmp.ne.s32.totalorder %s159, %s161
      %p168 = scmp.eq.s32.totalorder %s25, 1
      %p169 = por %p167, %p168
      %p170 = scmp.ne.s32.totalorder %s161, %s162
      %p171 = scmp.eq.s32.totalorder %s25, 0
      %p172 = por %p170, %p171
      %p173 = scmp.ne.s32.totalorder %s161, %s162
      %p174 = scmp.eq.s32.totalorder %s26, 1
      %p175 = por %p173, %p174
      %p177 = scmp.ne.s32.totalorder %s162, %s176
      %p178 = scmp.eq.s32.totalorder %s26, 0
      %p179 = por %p177, %p178
      %s181 = sadd.s32 %s180, 1
      %p184 = scmp.eq.s32.totalorder %s20, 1
      %p185 = scmp.ne.s32.totalorder %s180, %s182
      %p186 = scmp.eq.s32.totalorder %s20, 0
      %p187 = por %p185, %p186
      %p188 = scmp.ne.s32.totalorder %s180, %s182
      %p189 = scmp.eq.s32.totalorder %s25, 1
      %p190 = por %p188, %p189
      %p191 = scmp.ne.s32.totalorder %s182, %s183
      %p192 = scmp.eq.s32.totalorder %s25, 0
      %p193 = por %p191, %p192
      %p194 = scmp.ne.s32.totalorder %s182, %s183
      %p195 = scmp.eq.s32.totalorder %s26, 1
      %p196 = por %p194, %p195
      %p198 = scmp.ne.s32.totalorder %s183, %s197
      %p199 = scmp.eq.s32.totalorder %s26, 0
      %p200 = por %p198, %p199
      %s202 = sadd.s32 %s201, 1
      %p205 = scmp.eq.s32.totalorder %s20, 1
      %p206 = scmp.ne.s32.totalorder %s201, %s203
      %p207 = scmp.eq.s32.totalorder %s20, 0
      %p208 = por %p206, %p207
      %p209 = scmp.ne.s32.totalorder %s201, %s203
      %p210 = scmp.eq.s32.totalorder %s25, 1
      %p211 = por %p209, %p210
      %p212 = scmp.ne.s32.totalorder %s203, %s204
      %p213 = scmp.eq.s32.totalorder %s25, 0
      %p214 = por %p212, %p213
      %p215 = scmp.ne.s32.totalorder %s203, %s204
      %p216 = scmp.eq.s32.totalorder %s26, 1
      %p217 = por %p215, %p216
      %p219 = scmp.ne.s32.totalorder %s204, %s218
      %p220 = scmp.eq.s32.totalorder %s26, 0
      %p221 = por %p219, %p220
      %s222 = ssub.s32 %s20, %s27
      %p223 = scmp.eq.s32.totalorder %s222, 0
      %s225 = sadd.s32 %s224, 1
      %s226 = scalar_select %p223, %s224, %s225
      %p229 = pneg %p223
      %p230 = scmp.eq.s32.totalorder %s20, 1
      %p231 = por %p229, %p230
      %p232 = scmp.ne.s32.totalorder %s224, %s227
      %p233 = scmp.eq.s32.totalorder %s20, 0
      %p234 = por %p232, %p233
      %p235 = scmp.ne.s32.totalorder %s224, %s227
      %p236 = scmp.eq.s32.totalorder %s25, 1
      %p237 = por %p235, %p236
      %p238 = scmp.ne.s32.totalorder %s227, %s228
      %p239 = scmp.eq.s32.totalorder %s25, 0
      %p240 = por %p238, %p239
      %p241 = scmp.ne.s32.totalorder %s227, %s228
      %p242 = scmp.eq.s32.totalorder %s26, 1
      %p243 = por %p241, %p242
      %p245 = scmp.ne.s32.totalorder %s228, %s244
      %p246 = scmp.eq.s32.totalorder %s26, 0
      %p247 = por %p245, %p246
      %p248 = scmp.le.s32.totalorder 1, %s20
      %p249 = scmp.lt.s32.totalorder %s20, 3
      %p250 = pnand %p248, %p249
      %p251 = pneg %p250
      // Predicated region
      $region9: #{mlp_forward.1} parent=5 // pred_check
        _
      $region10: #{mlp_forward.1} parent=5 // pred_check_branch
        %253 = sbr.rel (%p250) target = $region12
      $region11: #{mlp_forward.1} parent=5 // pred_region
        %s254 = ssub.s32 %s20, 1
        // Predicated region
        $region13: #{mlp_forward.1} parent=11 // pred_check
          %p255 = pneg %p67
        $region14: #{mlp_forward.1} parent=11 // pred_check_branch
          %257 = sbr.rel (%p255) target = $region16
        $region15: #{mlp_forward.1} parent=11 // pred_region
          %s259 = ssub.s32 1024, 1024
          %260 = vsyncadd [#allocation3], %s259
          %s261 = sshll.u32 [#allocation2], 4
          %s262 = int_to_ptr.vmem [resolvable:$true] %s261
          %267 = dma.hbm_to_vmem [thread:$0]  %s1, 1024, %s262, [#allocation3], 256, 256, 16
        $region16: #{mlp_forward.1} parent=11 // pred_fallthru
          _
        // Predicated region
        $region17: #{mlp_forward.1} parent=11 // pred_check
          %p268 = pneg %p88
        $region18: #{mlp_forward.1} parent=11 // pred_check_branch
          %270 = sbr.rel (%p268) target = $region20
        $region19: #{mlp_forward.1} parent=11 // pred_region
          _
        $region20: #{mlp_forward.1} parent=11 // pred_fallthru
          _
        // Predicated region
        $region21: #{mlp_forward.1} parent=11 // pred_check
          %p271 = pneg %p109
        $region22: #{mlp_forward.1} parent=11 // pred_check_branch
          %273 = sbr.rel (%p271) target = $region24
        $region23: #{mlp_forward.1} parent=11 // pred_region
          %s275 = ssub.s32 4096, 4096
          %276 = vsyncadd [#allocation6], %s275
          %s277 = sshll.u32 [#allocation5], 4
          %s278 = int_to_ptr.vmem [resolvable:$true] %s277
          %283 = dma.hbm_to_vmem [thread:$0]  %s3, 4096, %s278, [#allocation6], 128, 128, 8
        $region24: #{mlp_forward.1} parent=11 // pred_fallthru
          _
        // Predicated region
        $region25: #{mlp_forward.1} parent=11 // pred_check
          %p284 = pneg %p130
        $region26: #{mlp_forward.1} parent=11 // pred_check_branch
          %286 = sbr.rel (%p284) target = $region28
        $region27: #{mlp_forward.1} parent=11 // pred_region
          _
        $region28: #{mlp_forward.1} parent=11 // pred_fallthru
          _
        // Predicated region
        $region29: #{mlp_forward.1} parent=11 // pred_check
          %p287 = pneg %p151
        $region30: #{mlp_forward.1} parent=11 // pred_check_branch
          %289 = sbr.rel (%p287) target = $region32
        $region31: #{mlp_forward.1} parent=11 // pred_region
          _
        $region32: #{mlp_forward.1} parent=11 // pred_fallthru
          _
        // Predicated region
        $region33: #{mlp_forward.1} parent=11 // pred_check
          %p290 = pneg %p172
        $region34: #{mlp_forward.1} parent=11 // pred_check_branch
          %292 = sbr.rel (%p290) target = $region36
        $region35: #{mlp_forward.1} parent=11 // pred_region
          _
        $region36: #{mlp_forward.1} parent=11 // pred_fallthru
          _
        // Predicated region
        $region37: #{mlp_forward.1} parent=11 // pred_check
          %p293 = pneg %p193
        $region38: #{mlp_forward.1} parent=11 // pred_check_branch
          %295 = sbr.rel (%p293) target = $region40
        $region39: #{mlp_forward.1} parent=11 // pred_region
          _
        $region40: #{mlp_forward.1} parent=11 // pred_fallthru
          _
        // Predicated region
        $region41: #{mlp_forward.1} parent=11 // pred_check
          %p296 = pneg %p214
        $region42: #{mlp_forward.1} parent=11 // pred_check_branch
          %298 = sbr.rel (%p296) target = $region44
        $region43: #{mlp_forward.1} parent=11 // pred_region
          _
        $region44: #{mlp_forward.1} parent=11 // pred_fallthru
          _
      $region12: #{mlp_forward.1} parent=5 // pred_fallthru
        _
      %p299 = scmp.lt.s32.totalorder %s20, 2
      // Predicated region
      $region45: #{mlp_forward.1} parent=5 // pred_check
        %p300 = pneg %p299
      $region46: #{mlp_forward.1} parent=5 // pred_check_branch
        %302 = sbr.rel (%p300) target = $region48
      $region47: #{mlp_forward.1} parent=5 // pred_region
        // Predicated region
        $region49: #{mlp_forward.1} parent=47 // pred_check
          %p303 = pneg %p40
        $region50: #{mlp_forward.1} parent=47 // pred_check_branch
          %305 = sbr.rel (%p303) target = $region52
        $region51: #{mlp_forward.1} parent=47 // pred_region
          %p306 = scmp.lt.s32.totalorder %s20, 1
          %s307 = scalar_select %p306, %s20, 1
          %s308 = smul.addr %s307, 8
          %s309 = scalar_lea.vmem %s0, %s308
        $region52: #{mlp_forward.1} parent=47 // pred_fallthru
          _
      $region48: #{mlp_forward.1} parent=5 // pred_fallthru
        _
      %p310 = scmp.le.s32.totalorder 1, %s20
      %p311 = scmp.lt.s32.totalorder %s20, 3
      %p312 = pnand %p310, %p311
      %p313 = pneg %p312
      // Predicated region
      $region53: #{mlp_forward.1} parent=5 // pred_check
        _
      $region54: #{mlp_forward.1} parent=5 // pred_check_branch
        %315 = sbr.rel (%p312) target = $region56
      $region55: #{mlp_forward.1} parent=5 // pred_region
        %s316 = ssub.s32 %s20, 1
        // Predicated region
        $region57: #{mlp_forward.1} parent=55 // pred_check
          %p317 = pneg %p67
        $region58: #{mlp_forward.1} parent=55 // pred_check_branch
          %319 = sbr.rel (%p317) target = $region60
        $region59: #{mlp_forward.1} parent=55 // pred_region
          %320 = dma.done [#allocation3], 1024
        $region60: #{mlp_forward.1} parent=55 // pred_fallthru
          _
        // Predicated region
        $region61: #{mlp_forward.1} parent=55 // pred_check
          %p321 = pneg %p109
        $region62: #{mlp_forward.1} parent=55 // pred_check_branch
          %323 = sbr.rel (%p321) target = $region64
        $region63: #{mlp_forward.1} parent=55 // pred_region
          %324 = dma.done [#allocation6], 4096
        $region64: #{mlp_forward.1} parent=55 // pred_fallthru
          _
        %p325 = scmp.lt.s32.totalorder %s25, 1
        %s326 = scalar_select %p325, %s25, 1
        %s327 = smul.addr %s326, 8
        %s328 = scalar_lea.vmem %s0, %s327
        %p329 = pneg %p46
        %p330 = pneg %p43
        %p331 = pneg %p67
        %p332 = pneg %p64
        %p333 = pneg %p88
        %p334 = pneg %p85
        %p335 = pneg %p109
        %p336 = pneg %p106
        %p337 = pneg %p130
        %p338 = pneg %p127
        %p339 = pneg %p151
        %p340 = pneg %p148
        %p341 = pneg %p172
        %p342 = pneg %p169
        %p343 = pneg %p193
        %p344 = pneg %p190
        %p345 = pneg %p214
        %p346 = pneg %p211
        %p347 = pneg %p240
        %p348 = pneg %p237
        %s349 = sand.u32 %s227, 1
        %s350 = scalar_lea.sflag [#allocation4], %s349
        %s351 = sand.u32 %s227, 1
        %s352 = smul.addr %s351, 8
        %s353 = scalar_lea.vmem [#allocation7], %s352
        %p354 = scmp.lt.s32.totalorder %s25, 1
        %s355 = scalar_select %p354, %s25, 1
        %s356 = smul.addr %s355, 8
        %s357 = scalar_lea.vmem %s0, %s356
        %v358 = vld [vmem:[%s357] sm:$0xff]
        %v359 = vld [vmem:[#allocation2] sm:$0xff]
        %v360 = vld [vmem:[#allocation2 + $0x8] sm:$0xff]
        %v361 = vld [vmem:[#allocation2 + $0x10] sm:$0xff]
        %v362 = vld [vmem:[#allocation2 + $0x18] sm:$0xff]
        %v363 = vld [vmem:[#allocation2 + $0x20] sm:$0xff]
        %v364 = vld [vmem:[#allocation2 + $0x28] sm:$0xff]
        %v365 = vld [vmem:[#allocation2 + $0x30] sm:$0xff]
        %v366 = vld [vmem:[#allocation2 + $0x38] sm:$0xff]
        %v367 = vld [vmem:[%s2] sm:$0x3]
        %v369 = vlaneseq
        %v370 = vshrl.u32 %v369, 7
        %v371 = vsub.s32 0, %v370
        %v372 = vrot.slane %v367, %v371
        %v373 = vlaneseq
        %v374 = vshrl.u32 %v373, 7
        %v375 = vsub.s32 1, %v374
        %v376 = vrot.slane %v367, %v375
        %vm379 = vcmask 261120
        %v381 = vsel %vm379, %v358, 0
        %383 = vmatprep.subr.mxu0 0.0
        %384 = vmatpush1.msra.mxu0 0.0
        %385 = vmatprep.subr.mxu0 0.0
        %386 = vmatpush1.msra.mxu0 0.0
        %387 = vmatprep.subr.mxu0 0.0
        %388 = vmatpush1.msra.mxu0 0.0
        %389 = vmatprep.subr.mxu0 0.0
        %390 = vmatpush1.msra.mxu0 0.0
        %391 = vmatprep.subr.mxu0 0.0
        %392 = vmatpush1.msra.mxu0 0.0
        %393 = vmatprep.subr.mxu0 0.0
        %394 = vmatpush1.msra.mxu0 0.0
        %395 = vmatprep.subr.mxu0 0.0
        %396 = vmatpush1.msra.mxu0 0.0
        %397 = vmatprep.subr.mxu0 0.0
        %398 = vmatpush1.msra.mxu0 0.0
        %399 = vmatprep.subr.mxu0 0.0
        %400 = vmatpush1.msra.mxu0 0.0
        %401 = vmatprep.subr.mxu0 0.0
        %402 = vmatpush1.msra.mxu0 0.0
        %403 = vmatprep.subr.mxu0 0.0
        %404 = vmatpush1.msra.mxu0 0.0
        %405 = vmatprep.subr.mxu0 0.0
        %406 = vmatpush1.msra.mxu0 0.0
        %407 = vmatprep.subr.mxu0 %v366
        %408 = vmatpush1.msra.mxu0 %v365
        %409 = vmatprep.subr.mxu0 %v364
        %410 = vmatpush1.msra.mxu0 %v363
        %411 = vmatprep.subr.mxu0 %v362
        %412 = vmatpush1.msra.mxu0 %v361
        %413 = vmatprep.subr.mxu0 %v360
        %414 = vmatpush1.msra.mxu0 %v359
        %415 = vmatprep.subr.mxu0 0.0
        %416 = vmatpush2.msra.mxu0 0.0
        %417 = vmatprep.subr.mxu0 0.0
        %418 = vmatpush2.msra.mxu0 0.0
        %419 = vmatprep.subr.mxu0 0.0
        %420 = vmatpush2.msra.mxu0 0.0
        %421 = vmatprep.subr.mxu0 0.0
        %422 = vmatpush2.msra.mxu0 0.0
        %423 = vmatprep.subr.mxu0 0.0
        %424 = vmatpush2.msra.mxu0 0.0
        %425 = vmatprep.subr.mxu0 0.0
        %426 = vmatpush2.msra.mxu0 0.0
        %427 = vmatprep.subr.mxu0 0.0
        %428 = vmatpush2.msra.mxu0 0.0
        %429 = vmatprep.subr.mxu0 0.0
        %430 = vmatpush2.msra.mxu0 0.0
        %431 = vmatprep.subr.mxu0 0.0
        %432 = vmatpush2.msra.mxu0 0.0
        %433 = vmatprep.subr.mxu0 0.0
        %434 = vmatpush2.msra.mxu0 0.0
        %435 = vmatprep.subr.mxu0 0.0
        %436 = vmatpush2.msra.mxu0 0.0
        %437 = vmatprep.subr.mxu0 0.0
        %438 = vmatpush2.msra.mxu0 0.0
        %439 = vmatprep.subr.mxu0 0.0
        %440 = vmatpush2.msra.mxu0 0.0
        %441 = vmatprep.subr.mxu0 0.0
        %442 = vmatpush2.msra.mxu0 0.0
        %443 = vmatprep.subr.mxu0 0.0
        %444 = vmatpush2.msra.mxu0 0.0
        %445 = vmatprep.subr.mxu0 0.0
        %446 = vmatpush2.msra.mxu0 0.0
        %447 = vmatprep.mubr.f32.mxu0 0.0
        %448 = vmatmul.mubr.f32.gmra.mxu0 %v381
        %v449 = vpop.f32.mrf.mxu0
        %v450 = vadd.f32 %v372, %v449
        %v451 = vpop.f32.mrf.mxu0
        %v452 = vadd.f32 %v376, %v451
        %453 = vdwg.mxu0
        %vm454 = vcmp.ge.f32.partialorder %v450, 0.0
        %vm455 = vcmp.ge.f32.partialorder %v452, 0.0
        %v456 = vmul.f32 %v450, 0.01
        %v457 = vmul.f32 %v452, 0.01
        %v458 = vsel %vm454, %v450, %v456
        %v459 = vsel %vm455, %v452, %v457
        %v460 = vld [vmem:[#allocation5] sm:$0xff]
        %v461 = vld [vmem:[#allocation5 + $0x8] sm:$0xff]
        %v462 = vld [vmem:[#allocation5 + $0x10] sm:$0xff]
        %v463 = vld [vmem:[#allocation5 + $0x18] sm:$0xff]
        %v464 = vld [vmem:[#allocation5 + $0x20] sm:$0xff]
        %v465 = vld [vmem:[#allocation5 + $0x28] sm:$0xff]
        %v466 = vld [vmem:[#allocation5 + $0x30] sm:$0xff]
        %v467 = vld [vmem:[#allocation5 + $0x38] sm:$0xff]
        %v468 = vld [vmem:[#allocation5 + $0x40] sm:$0xff]
        %v469 = vld [vmem:[#allocation5 + $0x48] sm:$0xff]
        %v470 = vld [vmem:[#allocation5 + $0x50] sm:$0xff]
        %v471 = vld [vmem:[#allocation5 + $0x58] sm:$0xff]
        %v472 = vld [vmem:[#allocation5 + $0x60] sm:$0xff]
        %v473 = vld [vmem:[#allocation5 + $0x68] sm:$0xff]
        %v474 = vld [vmem:[#allocation5 + $0x70] sm:$0xff]
        %v475 = vld [vmem:[#allocation5 + $0x78] sm:$0xff]
        %v476 = vld [vmem:[#allocation5 + $0x80] sm:$0xff]
        %v477 = vld [vmem:[#allocation5 + $0x88] sm:$0xff]
        %v478 = vld [vmem:[#allocation5 + $0x90] sm:$0xff]
        %v479 = vld [vmem:[#allocation5 + $0x98] sm:$0xff]
        %v480 = vld [vmem:[#allocation5 + $0xa0] sm:$0xff]
        %v481 = vld [vmem:[#allocation5 + $0xa8] sm:$0xff]
        %v482 = vld [vmem:[#allocation5 + $0xb0] sm:$0xff]
        %v483 = vld [vmem:[#allocation5 + $0xb8] sm:$0xff]
        %v484 = vld [vmem:[#allocation5 + $0xc0] sm:$0xff]
        %v485 = vld [vmem:[#allocation5 + $0xc8] sm:$0xff]
        %v486 = vld [vmem:[#allocation5 + $0xd0] sm:$0xff]
        %v487 = vld [vmem:[#allocation5 + $0xd8] sm:$0xff]
        %v488 = vld [vmem:[#allocation5 + $0xe0] sm:$0xff]
        %v489 = vld [vmem:[#allocation5 + $0xe8] sm:$0xff]
        %v490 = vld [vmem:[#allocation5 + $0xf0] sm:$0xff]
        %v491 = vld [vmem:[#allocation5 + $0xf8] sm:$0xff]
        %v492 = vld [vmem:[%s4] sm:$0x1]
        %v494 = vlaneseq
        %v495 = vshrl.u32 %v494, 7
        %v496 = vsub.s32 0, %v495
        %v497 = vrot.slane %v492, %v496
        %499 = vmatprep.subr.mxu0 0.0
        %500 = vmatpush1.msra.mxu0 %v475
        %501 = vmatprep.subr.mxu0 0.0
        %502 = vmatpush1.msra.mxu0 %v474
        %503 = vmatprep.subr.mxu0 0.0
        %504 = vmatpush1.msra.mxu0 %v473
        %505 = vmatprep.subr.mxu0 0.0
        %506 = vmatpush1.msra.mxu0 %v472
        %507 = vmatprep.subr.mxu0 0.0
        %508 = vmatpush1.msra.mxu0 %v471
        %509 = vmatprep.subr.mxu0 0.0
        %510 = vmatpush1.msra.mxu0 %v470
        %511 = vmatprep.subr.mxu0 0.0
        %512 = vmatpush1.msra.mxu0 %v469
        %513 = vmatprep.subr.mxu0 0.0
        %514 = vmatpush1.msra.mxu0 %v468
        %515 = vmatprep.subr.mxu0 0.0
        %516 = vmatpush1.msra.mxu0 %v467
        %517 = vmatprep.subr.mxu0 0.0
        %518 = vmatpush1.msra.mxu0 %v466
        %519 = vmatprep.subr.mxu0 0.0
        %520 = vmatpush1.msra.mxu0 %v465
        %521 = vmatprep.subr.mxu0 0.0
        %522 = vmatpush1.msra.mxu0 %v464
        %523 = vmatprep.subr.mxu0 0.0
        %524 = vmatpush1.msra.mxu0 %v463
        %525 = vmatprep.subr.mxu0 0.0
        %526 = vmatpush1.msra.mxu0 %v462
        %527 = vmatprep.subr.mxu0 0.0
        %528 = vmatpush1.msra.mxu0 %v461
        %529 = vmatprep.subr.mxu0 0.0
        %530 = vmatpush1.msra.mxu0 %v460
        %531 = vmatprep.subr.mxu0 0.0
        %532 = vmatpush2.msra.mxu0 %v491
        %533 = vmatprep.subr.mxu0 0.0
        %534 = vmatpush2.msra.mxu0 %v490
        %535 = vmatprep.subr.mxu0 0.0
        %536 = vmatpush2.msra.mxu0 %v489
        %537 = vmatprep.subr.mxu0 0.0
        %538 = vmatpush2.msra.mxu0 %v488
        %539 = vmatprep.subr.mxu0 0.0
        %540 = vmatpush2.msra.mxu0 %v487
        %541 = vmatprep.subr.mxu0 0.0
        %542 = vmatpush2.msra.mxu0 %v486
        %543 = vmatprep.subr.mxu0 0.0
        %544 = vmatpush2.msra.mxu0 %v485
        %545 = vmatprep.subr.mxu0 0.0
        %546 = vmatpush2.msra.mxu0 %v484
        %547 = vmatprep.subr.mxu0 0.0
        %548 = vmatpush2.msra.mxu0 %v483
        %549 = vmatprep.subr.mxu0 0.0
        %550 = vmatpush2.msra.mxu0 %v482
        %551 = vmatprep.subr.mxu0 0.0
        %552 = vmatpush2.msra.mxu0 %v481
        %553 = vmatprep.subr.mxu0 0.0
        %554 = vmatpush2.msra.mxu0 %v480
        %555 = vmatprep.subr.mxu0 0.0
        %556 = vmatpush2.msra.mxu0 %v479
        %557 = vmatprep.subr.mxu0 0.0
        %558 = vmatpush2.msra.mxu0 %v478
        %559 = vmatprep.subr.mxu0 0.0
        %560 = vmatpush2.msra.mxu0 %v477
        %561 = vmatprep.subr.mxu0 0.0
        %562 = vmatpush2.msra.mxu0 %v476
        %563 = vmatprep.mubr.f32.mxu0 %v459
        %564 = vmatmul.mubr.f32.gmra.mxu0 %v458
        %v565 = vpop.f32.mrf.mxu0
        %v566 = vadd.f32 %v497, %v565
        %v567 = vpop.f32.mrf.mxu0
        %568 = vdwg.mxu0
        %vm569 = vcmp.ge.f32.partialorder %v566, 0.0
        %v570 = vmul.f32 %v566, 0.01
        %v571 = vsel %vm569, %v566, %v570
        %v572 = vld [vmem:[%s5] sm:$0xff]
        %v573 = vld [vmem:[%s5 + $0x8] sm:$0xff]
        %v574 = vld [vmem:[%s5 + $0x10] sm:$0xff]
        %v575 = vld [vmem:[%s5 + $0x18] sm:$0xff]
        %v576 = vld [vmem:[%s5 + $0x20] sm:$0xff]
        %v577 = vld [vmem:[%s5 + $0x28] sm:$0xff]
        %v578 = vld [vmem:[%s5 + $0x30] sm:$0xff]
        %v579 = vld [vmem:[%s5 + $0x38] sm:$0xff]
        %v580 = vld [vmem:[%s5 + $0x40] sm:$0xff]
        %v581 = vld [vmem:[%s5 + $0x48] sm:$0xff]
        %v582 = vld [vmem:[%s5 + $0x50] sm:$0xff]
        %v583 = vld [vmem:[%s5 + $0x58] sm:$0xff]
        %v584 = vld [vmem:[%s5 + $0x60] sm:$0xff]
        %v585 = vld [vmem:[%s5 + $0x68] sm:$0xff]
        %v586 = vld [vmem:[%s5 + $0x70] sm:$0xff]
        %v587 = vld [vmem:[%s5 + $0x78] sm:$0xff]
        %v588 = vld [vmem:[%s6] sm:$0x1]
        %v590 = vlaneseq
        %v591 = vshrl.u32 %v590, 7
        %v592 = vsub.s32 0, %v591
        %v593 = vrot.slane %v588, %v592
        %595 = vmatprep.subr.mxu0 0.0
        %596 = vmatpush1.msra.mxu0 %v587
        %597 = vmatprep.subr.mxu0 0.0
        %598 = vmatpush1.msra.mxu0 %v586
        %599 = vmatprep.subr.mxu0 0.0
        %600 = vmatpush1.msra.mxu0 %v585
        %601 = vmatprep.subr.mxu0 0.0
        %602 = vmatpush1.msra.mxu0 %v584
        %603 = vmatprep.subr.mxu0 0.0
        %604 = vmatpush1.msra.mxu0 %v583
        %605 = vmatprep.subr.mxu0 0.0
        %606 = vmatpush1.msra.mxu0 %v582
        %607 = vmatprep.subr.mxu0 0.0
        %608 = vmatpush1.msra.mxu0 %v581
        %609 = vmatprep.subr.mxu0 0.0
        %610 = vmatpush1.msra.mxu0 %v580
        %611 = vmatprep.subr.mxu0 0.0
        %612 = vmatpush1.msra.mxu0 %v579
        %613 = vmatprep.subr.mxu0 0.0
        %614 = vmatpush1.msra.mxu0 %v578
        %615 = vmatprep.subr.mxu0 0.0
        %616 = vmatpush1.msra.mxu0 %v577
        %617 = vmatprep.subr.mxu0 0.0
        %618 = vmatpush1.msra.mxu0 %v576
        %619 = vmatprep.subr.mxu0 0.0
        %620 = vmatpush1.msra.mxu0 %v575
        %621 = vmatprep.subr.mxu0 0.0
        %622 = vmatpush1.msra.mxu0 %v574
        %623 = vmatprep.subr.mxu0 0.0
        %624 = vmatpush1.msra.mxu0 %v573
        %625 = vmatprep.subr.mxu0 0.0
        %626 = vmatpush1.msra.mxu0 %v572
        %627 = vmatprep.subr.mxu0 0.0
        %628 = vmatpush2.msra.mxu0 0.0
        %629 = vmatprep.subr.mxu0 0.0
        %630 = vmatpush2.msra.mxu0 0.0
        %631 = vmatprep.subr.mxu0 0.0
        %632 = vmatpush2.msra.mxu0 0.0
        %633 = vmatprep.subr.mxu0 0.0
        %634 = vmatpush2.msra.mxu0 0.0
        %635 = vmatprep.subr.mxu0 0.0
        %636 = vmatpush2.msra.mxu0 0.0
        %637 = vmatprep.subr.mxu0 0.0
        %638 = vmatpush2.msra.mxu0 0.0
        %639 = vmatprep.subr.mxu0 0.0
        %640 = vmatpush2.msra.mxu0 0.0
        %641 = vmatprep.subr.mxu0 0.0
        %642 = vmatpush2.msra.mxu0 0.0
        %643 = vmatprep.subr.mxu0 0.0
        %644 = vmatpush2.msra.mxu0 0.0
        %645 = vmatprep.subr.mxu0 0.0
        %646 = vmatpush2.msra.mxu0 0.0
        %647 = vmatprep.subr.mxu0 0.0
        %648 = vmatpush2.msra.mxu0 0.0
        %649 = vmatprep.subr.mxu0 0.0
        %650 = vmatpush2.msra.mxu0 0.0
        %651 = vmatprep.subr.mxu0 0.0
        %652 = vmatpush2.msra.mxu0 0.0
        %653 = vmatprep.subr.mxu0 0.0
        %654 = vmatpush2.msra.mxu0 0.0
        %655 = vmatprep.subr.mxu0 0.0
        %656 = vmatpush2.msra.mxu0 0.0
        %657 = vmatprep.subr.mxu0 0.0
        %658 = vmatpush2.msra.mxu0 0.0
        %659 = vmatprep.mubr.f32.mxu0 0.0
        %660 = vmatmul.mubr.f32.gmra.mxu0 %v571
        %v661 = vpop.f32.mrf.mxu0
        %v662 = vadd.f32 %v593, %v661
        %v663 = vpop.f32.mrf.mxu0
        %664 = vdwg.mxu0
        %vm665 = vcmp.ge.f32.partialorder %v662, 0.0
        %v666 = vmul.f32 %v662, 0.01
        %v667 = vsel %vm665, %v662, %v666
        %v668 = vld [vmem:[%s7] sm:$0xff]
        %v669 = vld [vmem:[%s7 + $0x8] sm:$0xff]
        %v670 = vld [vmem:[%s7 + $0x10] sm:$0xff]
        %v671 = vld [vmem:[%s7 + $0x18] sm:$0xff]
        %v672 = vld [vmem:[%s7 + $0x20] sm:$0xff]
        %v673 = vld [vmem:[%s7 + $0x28] sm:$0xff]
        %v674 = vld [vmem:[%s7 + $0x30] sm:$0xff]
        %v675 = vld [vmem:[%s7 + $0x38] sm:$0xff]
        %v676 = vld [vmem:[%s7 + $0x40] sm:$0xff]
        %v677 = vld [vmem:[%s7 + $0x48] sm:$0xff]
        %v678 = vld [vmem:[%s7 + $0x50] sm:$0xff]
        %v679 = vld [vmem:[%s7 + $0x58] sm:$0xff]
        %v680 = vld [vmem:[%s7 + $0x60] sm:$0xff]
        %v681 = vld [vmem:[%s7 + $0x68] sm:$0xff]
        %v682 = vld [vmem:[%s7 + $0x70] sm:$0xff]
        %v683 = vld [vmem:[%s7 + $0x78] sm:$0xff]
        %v684 = vld [vmem:[%s8] sm:$0x1]
        %v686 = vlaneseq
        %v687 = vshrl.u32 %v686, 7
        %v688 = vsub.s32 0, %v687
        %v689 = vrot.slane %v684, %v688
        %691 = vmatprep.subr.mxu0 0.0
        %692 = vmatpush1.msra.mxu0 %v683
        %693 = vmatprep.subr.mxu0 0.0
        %694 = vmatpush1.msra.mxu0 %v682
        %695 = vmatprep.subr.mxu0 0.0
        %696 = vmatpush1.msra.mxu0 %v681
        %697 = vmatprep.subr.mxu0 0.0
        %698 = vmatpush1.msra.mxu0 %v680
        %699 = vmatprep.subr.mxu0 0.0
        %700 = vmatpush1.msra.mxu0 %v679
        %701 = vmatprep.subr.mxu0 0.0
        %702 = vmatpush1.msra.mxu0 %v678
        %703 = vmatprep.subr.mxu0 0.0
        %704 = vmatpush1.msra.mxu0 %v677
        %705 = vmatprep.subr.mxu0 0.0
        %706 = vmatpush1.msra.mxu0 %v676
        %707 = vmatprep.subr.mxu0 0.0
        %708 = vmatpush1.msra.mxu0 %v675
        %709 = vmatprep.subr.mxu0 0.0
        %710 = vmatpush1.msra.mxu0 %v674
        %711 = vmatprep.subr.mxu0 0.0
        %712 = vmatpush1.msra.mxu0 %v673
        %713 = vmatprep.subr.mxu0 0.0
        %714 = vmatpush1.msra.mxu0 %v672
        %715 = vmatprep.subr.mxu0 0.0
        %716 = vmatpush1.msra.mxu0 %v671
        %717 = vmatprep.subr.mxu0 0.0
        %718 = vmatpush1.msra.mxu0 %v670
        %719 = vmatprep.subr.mxu0 0.0
        %720 = vmatpush1.msra.mxu0 %v669
        %721 = vmatprep.subr.mxu0 0.0
        %722 = vmatpush1.msra.mxu0 %v668
        %723 = vmatprep.subr.mxu0 0.0
        %724 = vmatpush2.msra.mxu0 0.0
        %725 = vmatprep.subr.mxu0 0.0
        %726 = vmatpush2.msra.mxu0 0.0
        %727 = vmatprep.subr.mxu0 0.0
        %728 = vmatpush2.msra.mxu0 0.0
        %729 = vmatprep.subr.mxu0 0.0
        %730 = vmatpush2.msra.mxu0 0.0
        %731 = vmatprep.subr.mxu0 0.0
        %732 = vmatpush2.msra.mxu0 0.0
        %733 = vmatprep.subr.mxu0 0.0
        %734 = vmatpush2.msra.mxu0 0.0
        %735 = vmatprep.subr.mxu0 0.0
        %736 = vmatpush2.msra.mxu0 0.0
        %737 = vmatprep.subr.mxu0 0.0
        %738 = vmatpush2.msra.mxu0 0.0
        %739 = vmatprep.subr.mxu0 0.0
        %740 = vmatpush2.msra.mxu0 0.0
        %741 = vmatprep.subr.mxu0 0.0
        %742 = vmatpush2.msra.mxu0 0.0
        %743 = vmatprep.subr.mxu0 0.0
        %744 = vmatpush2.msra.mxu0 0.0
        %745 = vmatprep.subr.mxu0 0.0
        %746 = vmatpush2.msra.mxu0 0.0
        %747 = vmatprep.subr.mxu0 0.0
        %748 = vmatpush2.msra.mxu0 0.0
        %749 = vmatprep.subr.mxu0 0.0
        %750 = vmatpush2.msra.mxu0 0.0
        %751 = vmatprep.subr.mxu0 0.0
        %752 = vmatpush2.msra.mxu0 0.0
        %753 = vmatprep.subr.mxu0 0.0
        %754 = vmatpush2.msra.mxu0 0.0
        %755 = vmatprep.mubr.f32.mxu0 0.0
        %756 = vmatmul.mubr.f32.gmra.mxu0 %v667
        %v757 = vpop.f32.mrf.mxu0
        %v758 = vadd.f32 %v689, %v757
        %v759 = vpop.f32.mrf.mxu0
        %760 = vdwg.mxu0
        %vm761 = vcmask 130048
        %762 = vst.msk [vmem:[%s353] sm:$0xff] %vm761, %v758
        %s763 = sand.u32 %s227, 1
        %s764 = scalar_lea.sflag [#allocation4], %s763
        %s765 = sand.u32 %s227, 1
        %s766 = smul.addr %s765, 8
        %s767 = scalar_lea.vmem [#allocation7], %s766
        // Predicated region
        $region65: #{mlp_forward.1} parent=55 // pred_check
          %p768 = pneg %p237
        $region66: #{mlp_forward.1} parent=55 // pred_check_branch
          %770 = sbr.rel (%p768) target = $region68
        $region67: #{mlp_forward.1} parent=55 // pred_region
          %s772 = ssub.s32 128, 128
          %773 = vsyncadd %s764, %s772
          %s774 = smul.addr %s25, 128
          %s775 = scalar_lea.hbm %s9, %s774
          %s777 = sshll.u32 %s767, 4
          %s778 = int_to_ptr.vmem [resolvable:$true] %s777
          %780 = dma.vmem_to_hbm [thread:$0]  %s778, 128, %s775, %s764
        $region68: #{mlp_forward.1} parent=55 // pred_fallthru
          _
      $region56: #{mlp_forward.1} parent=5 // pred_fallthru
        _
      %p781 = scmp.le.s32.totalorder 2, %s20
      // Predicated region
      $region69: #{mlp_forward.1} parent=5 // pred_check
        %p782 = pneg %p781
      $region70: #{mlp_forward.1} parent=5 // pred_check_branch
        %784 = sbr.rel (%p782) target = $region72
      $region71: #{mlp_forward.1} parent=5 // pred_region
        %s785 = ssub.s32 %s20, 2
        // Predicated region
        $region73: #{mlp_forward.1} parent=71 // pred_check
          %p786 = pneg %p243
        $region74: #{mlp_forward.1} parent=71 // pred_check_branch
          %788 = sbr.rel (%p786) target = $region76
        $region75: #{mlp_forward.1} parent=71 // pred_region
          %s789 = sand.u32 %s228, 1
          %s790 = scalar_lea.sflag [#allocation4], %s789
          %s791 = sand.u32 %s228, 1
          %s792 = smul.addr %s791, 8
          %s793 = scalar_lea.vmem [#allocation7], %s792
          %794 = dma.done %s790, 128
        $region76: #{mlp_forward.1} parent=71 // pred_fallthru
          _
      $region72: #{mlp_forward.1} parent=5 // pred_fallthru
        _
    $region6: #{mlp_forward.1} parent=1 // loop_footer
      %s24 = sadd.s32 1, %s20
    $region7: #{mlp_forward.1} parent=1 // loop_footer_branch
      %19 = sbr.rel target = $region3
    $region8: #{mlp_forward.1} parent=1 // loop_exit
      _
    %795 = vsyncpa [#allocation3], 1
    %s796 = scalar_lea.sflag [#allocation3], 1
    %797 = vsyncpa %s796, 1
    %798 = vsyncpa [#allocation6], 1
    %799 = vsyncpa [#allocation4], 1
    %s800 = scalar_lea.sflag [#allocation4], 1
    %801 = vsyncpa %s800, 1

</llo_original>
